<compile_context>
chip_gen: v5e
topology: v5e:2x2
jax: 0.10.0
libtpu: 0.0.40
codegen_flags: <defaults>
</compile_context>

<pallas_src>
import math
import functools

import jax
import jax.numpy as jnp
from jax import lax
from jax.experimental import pallas as pl
from jax.experimental.pallas import tpu as pltpu


def _mhsa_kernel(x_ref, wq_ref, bq_ref, wk_ref, bk_ref, wv_ref, bv_ref,
                 wfc_ref, bfc_ref, o_ref,
                 q_scr, k_scr, v_scr, ctx_scr, *, n_heads: int, d_k: int):
    """One grid step == one batch element.

    x_ref    : (1, S, D)   compute dtype (bf16)
    w{q,k,v} : (D, D)      compute dtype, resident (single-buffered); scale folded into wq
    b{q,k,v} : (1, D)      f32, resident; scale folded into bq
    wfc_ref  : (D, D)      compute dtype, resident
    bfc_ref  : (1, D)      f32, resident
    o_ref    : (1, S, D)   output block
    q/k/v/ctx_scr : (S, D) compute-dtype VMEM scratch
    """
    x = x_ref[0]                      # (S, D), compute dtype
    cdt = x.dtype

    # --- full-width projections (MXU, bf16 in / f32 accumulate), lane-dense N=D ---
    q_scr[...] = (jnp.dot(x, wq_ref[...], preferred_element_type=jnp.float32)
                  + bq_ref[...]).astype(cdt)
    k_scr[...] = (jnp.dot(x, wk_ref[...], preferred_element_type=jnp.float32)
                  + bk_ref[...]).astype(cdt)
    v_scr[...] = (jnp.dot(x, wv_ref[...], preferred_element_type=jnp.float32)
                  + bv_ref[...]).astype(cdt)

    # --- per-head attention, static in-body loop (no grid-step overhead) ---
    for h in range(n_heads):
        lo = h * d_k
        hi = lo + d_k
        qh = q_scr[:, lo:hi]          # (S, d_k) bf16
        kh = k_scr[:, lo:hi]
        vh = v_scr[:, lo:hi]

        # scores: Q @ K^T with the transpose folded into dot_general
        s = lax.dot_general(qh, kh,
                            dimension_numbers=(((1,), (1,)), ((), ())),
                            preferred_element_type=jnp.float32)      # (S, S) f32

        # numerically stable softmax (stats in f32)
        m = jnp.max(s, axis=-1, keepdims=True)
        p = jnp.exp(s - m)
        denom = jnp.sum(p, axis=-1, keepdims=True)

        # P @ V first; divide by the denominator afterwards (EUP reciprocal)
        o_h = jnp.dot(p.astype(cdt), vh,
                      preferred_element_type=jnp.float32)            # (S, d_k)
        o_h = o_h * pl.reciprocal(denom, approx=True)

        # concatenate heads by writing the column slice of the context scratch
        ctx_scr[:, lo:hi] = o_h.astype(cdt)

    # --- single full-depth output projection (K = D) + bias ---
    out = jnp.dot(ctx_scr[...], wfc_ref[...],
                  preferred_element_type=jnp.float32) + bfc_ref[...]
    o_ref[0] = out.astype(o_ref.dtype)


def mhsa_pallas(x, wq, bq, wk, bk, wv, bv, wfc, bfc, *, n_heads: int,
                compute_dtype=jnp.bfloat16):
    """x: (B, S, D); weights (D, D) pre-transposed (x @ W layout); biases (D,)."""
    B, S, D = x.shape
    assert D % n_heads == 0
    d_k = D // n_heads
    out_dtype = x.dtype

    # One-time host-side weight prep: fold 1/sqrt(d_k) into Wq/bq, cast to compute dtype.
    scale = 1.0 / math.sqrt(d_k)
    wq_c = (wq * scale).astype(compute_dtype)
    wk_c = wk.astype(compute_dtype)
    wv_c = wv.astype(compute_dtype)
    wfc_c = wfc.astype(compute_dtype)

    bq_c = (bq * scale).reshape(1, D).astype(jnp.float32)
    bk_c = bk.reshape(1, D).astype(jnp.float32)
    bv_c = bv.reshape(1, D).astype(jnp.float32)
    bfc_c = bfc.reshape(1, D).astype(jnp.float32)

    x_c = x.astype(compute_dtype)

    # Resident (single-buffered) weight/bias specs: same block for every grid step.
    w_spec = pl.BlockSpec((D, D), lambda b: (0, 0), pipeline_mode=pl.Buffered(1))
    b_spec = pl.BlockSpec((1, D), lambda b: (0, 0), pipeline_mode=pl.Buffered(1))

    x_spec = pl.BlockSpec((1, S, D), lambda b: (b, 0, 0))
    o_spec = pl.BlockSpec((1, S, D), lambda b: (b, 0, 0))

    # Generation-aware VMEM limit: size from actual live buffers + headroom,
    # capped just below the physical VMEM of the chip we are running on.
    c_item = jnp.dtype(compute_dtype).itemsize
    o_item = jnp.dtype(out_dtype).itemsize
    needed_bytes = (
        4 * D * D * c_item            # Wq/Wk/Wv/Wfc, single-buffered
        + 4 * D * 4                   # biases (f32)
        + 2 * S * D * c_item          # x block, double-buffered
        + 2 * S * D * o_item          # output block, double-buffered
        + 4 * S * D * c_item          # q/k/v/ctx scratch
        + 3 * S * S * 4               # softmax working set (scores, probs, temp) f32
        + S * S * c_item              # bf16 cast of P for the MXU
    )
    try:
        phys_vmem = int(getattr(pltpu.get_tpu_info(), "vmem_capacity_bytes", 64 << 20))
    except Exception:
        phys_vmem = 64 << 20
    vmem_limit = int(min(phys_vmem - (4 << 20), needed_bytes + (8 << 20)))
    vmem_limit = max(vmem_limit, 16 << 20)

    kernel = functools.partial(_mhsa_kernel, n_heads=n_heads, d_k=d_k)

    return pl.pallas_call(
        kernel,
        out_shape=jax.ShapeDtypeStruct((B, S, D), out_dtype),
        grid_spec=pltpu.PrefetchScalarGridSpec(
            num_scalar_prefetch=0,
            grid=(B,),
            in_specs=[x_spec,
                      w_spec, b_spec,
                      w_spec, b_spec,
                      w_spec, b_spec,
                      w_spec, b_spec],
            out_specs=o_spec,
            scratch_shapes=[pltpu.VMEM((S, D), compute_dtype),   # q
                            pltpu.VMEM((S, D), compute_dtype),   # k
                            pltpu.VMEM((S, D), compute_dtype),   # v
                            pltpu.VMEM((S, D), compute_dtype)],  # ctx (concat heads)
        ),
        compiler_params=pltpu.CompilerParams(
            dimension_semantics=("parallel",),
            vmem_limit_bytes=vmem_limit),
    )(x_c, wq_c, bq_c, wk_c, bk_c, wv_c, bv_c, wfc_c, bfc_c)


def _ref_mhsa(x, wq, bq, wk, bk, wv, bv, wfc, bfc, n_heads):
    """Pure-JAX f32 reference mirroring the PyTorch forward (eval mode, mask=None)."""
    B, S, D = x.shape
    d_k = D // n_heads
    q = x @ wq + bq
    k = x @ wk + bk
    v = x @ wv + bv
    q = q.reshape(B, S, n_heads, d_k).transpose(0, 2, 1, 3)
    k = k.reshape(B, S, n_heads, d_k).transpose(0, 2, 1, 3)
    v = v.reshape(B, S, n_heads, d_k).transpose(0, 2, 1, 3)
    scores = jnp.einsum("bhqd,bhkd->bhqk", q, k) / math.sqrt(d_k)
    attn = jax.nn.softmax(scores, axis=-1)
    out = jnp.einsum("bhqk,bhkd->bhqd", attn, v)
    out = out.transpose(0, 2, 1, 3).reshape(B, S, D)
    return out @ wfc + bfc


def _torch_linear_init(key, d_out, d_in):
    """Deterministic init matching nn.Linear's uniform(-1/sqrt(in), 1/sqrt(in))."""
    kw, kb = jax.random.split(key)
    bound = 1.0 / math.sqrt(d_in)
    w = jax.random.uniform(kw, (d_out, d_in), jnp.float32, -bound, bound)
    b = jax.random.uniform(kb, (d_out,), jnp.float32, -bound, bound)
    return w, b


if __name__ == "__main__":
    B, S, D, H = 2, 8, 32, 4

    key = jax.random.PRNGKey(0)
    kx, kq, kk, kv, kf = jax.random.split(key, 5)

    x = jax.random.normal(kx, (B, S, D), jnp.float32)

    wq_t, bq = _torch_linear_init(kq, D, D)   # torch layout (out, in)
    wk_t, bk = _torch_linear_init(kk, D, D)
    wv_t, bv = _torch_linear_init(kv, D, D)
    wf_t, bf = _torch_linear_init(kf, D, D)

    # pre-transpose so the kernel computes x @ W + b
    wq, wk, wv, wfc = wq_t.T, wk_t.T, wv_t.T, wf_t.T

    y = mhsa_pallas(x, wq, bq, wk, bk, wv, bv, wfc, bf, n_heads=H)
    y = jax.block_until_ready(y)

    y_ref = _ref_mhsa(x, wq, bq, wk, bk, wv, bv, wfc, bf, H)
    # bf16 MXU inputs + approx reciprocal => looser tolerance than pure f32.
    if not jnp.allclose(y, y_ref, atol=2e-2, rtol=2e-2):
        err = float(jnp.max(jnp.abs(y - y_ref)))
        raise AssertionError(f"Pallas MHSA does not match reference (max abs err {err})")

    print("KERNEL_OK")
</pallas_src>

<mosaic_0001>
module attributes {stable_mosaic.version = 11 : i64} {
  func.func @_mhsa_kernel(%arg0: i32, %arg1: memref<1x8x32xbf16, #tpu.memory_space<vmem>>, %arg2: memref<32x32xbf16, #tpu.memory_space<vmem>>, %arg3: memref<1x32xf32, #tpu.memory_space<vmem>>, %arg4: memref<32x32xbf16, #tpu.memory_space<vmem>>, %arg5: memref<1x32xf32, #tpu.memory_space<vmem>>, %arg6: memref<32x32xbf16, #tpu.memory_space<vmem>>, %arg7: memref<1x32xf32, #tpu.memory_space<vmem>>, %arg8: memref<32x32xbf16, #tpu.memory_space<vmem>>, %arg9: memref<1x32xf32, #tpu.memory_space<vmem>>, %arg10: memref<1x8x32xf32, #tpu.memory_space<vmem>>, %arg11: memref<8x32xbf16, #tpu.memory_space<vmem>>, %arg12: memref<8x32xbf16, #tpu.memory_space<vmem>>, %arg13: memref<8x32xbf16, #tpu.memory_space<vmem>>, %arg14: memref<8x32xbf16, #tpu.memory_space<vmem>>) attributes {dimension_semantics = [#tpu.dimension_semantics<parallel>], iteration_bounds = array<i64: 2>, scalar_prefetch = 0 : i64, scratch_operands = 4 : i64, tpu.core_type = #tpu.core_type<tc>, window_params = [{transform_indices = @transform_0, window_bounds = array<i64: 1, 8, 32>}, {pipeline_mode = #tpu.pipeline_mode<synchronous>, transform_indices = @transform_1, window_bounds = array<i64: 32, 32>}, {pipeline_mode = #tpu.pipeline_mode<synchronous>, transform_indices = @transform_2, window_bounds = array<i64: 1, 32>}, {pipeline_mode = #tpu.pipeline_mode<synchronous>, transform_indices = @transform_3, window_bounds = array<i64: 32, 32>}, {pipeline_mode = #tpu.pipeline_mode<synchronous>, transform_indices = @transform_4, window_bounds = array<i64: 1, 32>}, {pipeline_mode = #tpu.pipeline_mode<synchronous>, transform_indices = @transform_5, window_bounds = array<i64: 32, 32>}, {pipeline_mode = #tpu.pipeline_mode<synchronous>, transform_indices = @transform_6, window_bounds = array<i64: 1, 32>}, {pipeline_mode = #tpu.pipeline_mode<synchronous>, transform_indices = @transform_7, window_bounds = array<i64: 32, 32>}, {pipeline_mode = #tpu.pipeline_mode<synchronous>, transform_indices = @transform_8, window_bounds = array<i64: 1, 32>}, {transform_indices = @transform_9, window_bounds = array<i64: 1, 8, 32>}]} {
    %c0 = arith.constant 0 : index
    %c0_0 = arith.constant 0 : index
    %c0_1 = arith.constant 0 : index
    %0 = vector.load %arg1[%c0, %c0_0, %c0_1] : memref<1x8x32xbf16, #tpu.memory_space<vmem>>, vector<1x8x32xbf16>
    %1 = vector.shape_cast %0 : vector<1x8x32xbf16> to vector<8x32xbf16>
    %c0_2 = arith.constant 0 : index
    %c0_3 = arith.constant 0 : index
    %2 = vector.load %arg2[%c0_2, %c0_3] : memref<32x32xbf16, #tpu.memory_space<vmem>>, vector<32x32xbf16>
    %cst = arith.constant dense<0.000000e+00> : vector<8x32xf32>
    %3 = tpu.matmul %1, %2, %cst {dimension_numbers = #tpu.dot_dimension_numbers<[1], [0], [0], [1], [0, 0, 1, 1], [], []>} : vector<8x32xbf16>, vector<32x32xbf16>, vector<8x32xf32> -> vector<8x32xf32>
    %c0_4 = arith.constant 0 : index
    %c0_5 = arith.constant 0 : index
    %4 = vector.load %arg3[%c0_4, %c0_5] : memref<1x32xf32, #tpu.memory_space<vmem>>, vector<1x32xf32>
    %5 = vector.broadcast %4 : vector<1x32xf32> to vector<8x32xf32>
    %6 = arith.addf %3, %5 : vector<8x32xf32>
    %7 = arith.truncf %6 : vector<8x32xf32> to vector<8x32xbf16>
    %c0_6 = arith.constant 0 : index
    %c0_7 = arith.constant 0 : index
    %8 = vector.load %arg11[%c0_6, %c0_7] : memref<8x32xbf16, #tpu.memory_space<vmem>>, vector<8x32xbf16>
    tpu.vector_store %arg11[%c0_6, %c0_7], %7 {strides = array<i32>} : memref<8x32xbf16, #tpu.memory_space<vmem>>, vector<8x32xbf16>,
    %c0_8 = arith.constant 0 : index
    %c0_9 = arith.constant 0 : index
    %9 = vector.load %arg4[%c0_8, %c0_9] : memref<32x32xbf16, #tpu.memory_space<vmem>>, vector<32x32xbf16>
    %cst_10 = arith.constant dense<0.000000e+00> : vector<8x32xf32>
    %10 = tpu.matmul %1, %9, %cst_10 {dimension_numbers = #tpu.dot_dimension_numbers<[1], [0], [0], [1], [0, 0, 1, 1], [], []>} : vector<8x32xbf16>, vector<32x32xbf16>, vector<8x32xf32> -> vector<8x32xf32>
    %c0_11 = arith.constant 0 : index
    %c0_12 = arith.constant 0 : index
    %11 = vector.load %arg5[%c0_11, %c0_12] : memref<1x32xf32, #tpu.memory_space<vmem>>, vector<1x32xf32>
    %12 = vector.broadcast %11 : vector<1x32xf32> to vector<8x32xf32>
    %13 = arith.addf %10, %12 : vector<8x32xf32>
    %14 = arith.truncf %13 : vector<8x32xf32> to vector<8x32xbf16>
    %c0_13 = arith.constant 0 : index
    %c0_14 = arith.constant 0 : index
    %15 = vector.load %arg12[%c0_13, %c0_14] : memref<8x32xbf16, #tpu.memory_space<vmem>>, vector<8x32xbf16>
    tpu.vector_store %arg12[%c0_13, %c0_14], %14 {strides = array<i32>} : memref<8x32xbf16, #tpu.memory_space<vmem>>, vector<8x32xbf16>,
    %c0_15 = arith.constant 0 : index
    %c0_16 = arith.constant 0 : index
    %16 = vector.load %arg6[%c0_15, %c0_16] : memref<32x32xbf16, #tpu.memory_space<vmem>>, vector<32x32xbf16>
    %cst_17 = arith.constant dense<0.000000e+00> : vector<8x32xf32>
    %17 = tpu.matmul %1, %16, %cst_17 {dimension_numbers = #tpu.dot_dimension_numbers<[1], [0], [0], [1], [0, 0, 1, 1], [], []>} : vector<8x32xbf16>, vector<32x32xbf16>, vector<8x32xf32> -> vector<8x32xf32>
    %c0_18 = arith.constant 0 : index
    %c0_19 = arith.constant 0 : index
    %18 = vector.load %arg7[%c0_18, %c0_19] : memref<1x32xf32, #tpu.memory_space<vmem>>, vector<1x32xf32>
    %19 = vector.broadcast %18 : vector<1x32xf32> to vector<8x32xf32>
    %20 = arith.addf %17, %19 : vector<8x32xf32>
    %21 = arith.truncf %20 : vector<8x32xf32> to vector<8x32xbf16>
    %c0_20 = arith.constant 0 : index
    %c0_21 = arith.constant 0 : index
    %22 = vector.load %arg13[%c0_20, %c0_21] : memref<8x32xbf16, #tpu.memory_space<vmem>>, vector<8x32xbf16>
    tpu.vector_store %arg13[%c0_20, %c0_21], %21 {strides = array<i32>} : memref<8x32xbf16, #tpu.memory_space<vmem>>, vector<8x32xbf16>,
    %c0_22 = arith.constant 0 : index
    %c0_23 = arith.constant 0 : index
    %23 = vector.load %arg11[%c0_22, %c0_23] : memref<8x32xbf16, #tpu.memory_space<vmem>>, vector<8x8xbf16>
    %c0_24 = arith.constant 0 : index
    %c0_25 = arith.constant 0 : index
    %24 = vector.load %arg12[%c0_24, %c0_25] : memref<8x32xbf16, #tpu.memory_space<vmem>>, vector<8x8xbf16>
    %c0_26 = arith.constant 0 : index
    %c0_27 = arith.constant 0 : index
    %25 = vector.load %arg13[%c0_26, %c0_27] : memref<8x32xbf16, #tpu.memory_space<vmem>>, vector<8x8xbf16>
    %cst_28 = arith.constant dense<0.000000e+00> : vector<8x8xf32>
    %26 = tpu.matmul %23, %24, %cst_28 {dimension_numbers = #tpu.dot_dimension_numbers<[1], [1], [0], [0], [0, 0, 1, 0], [], []>} : vector<8x8xbf16>, vector<8x8xbf16>, vector<8x8xf32> -> vector<8x8xf32>
    %cst_29 = arith.constant dense<0xFF800000> : vector<8xf32>
    %27 = vector.multi_reduction <maximumf>, %26, %cst_29 [1] : vector<8x8xf32> to vector<8xf32>
    %28 = vector.shape_cast %27 : vector<8xf32> to vector<8x1xf32>
    %29 = vector.broadcast %28 : vector<8x1xf32> to vector<8x8xf32>
    %30 = arith.subf %26, %29 : vector<8x8xf32>
    %31 = math.exp %30 : vector<8x8xf32>
    %cst_30 = arith.constant dense<0.000000e+00> : vector<8xf32>
    %32 = vector.multi_reduction <add>, %31, %cst_30 [1] : vector<8x8xf32> to vector<8xf32>
    %33 = vector.shape_cast %32 : vector<8xf32> to vector<8x1xf32>
    %34 = arith.truncf %31 : vector<8x8xf32> to vector<8x8xbf16>
    %cst_31 = arith.constant dense<0.000000e+00> : vector<8x8xf32>
    %35 = tpu.matmul %34, %25, %cst_31 {dimension_numbers = #tpu.dot_dimension_numbers<[1], [0], [0], [1], [0, 0, 1, 1], [], []>} : vector<8x8xbf16>, vector<8x8xbf16>, vector<8x8xf32> -> vector<8x8xf32>
    %36 = tpu.reciprocal %33 {approx = true} : vector<8x1xf32> -> vector<8x1xf32>
    %37 = vector.broadcast %36 : vector<8x1xf32> to vector<8x8xf32>
    %38 = arith.mulf %35, %37 : vector<8x8xf32>
    %39 = arith.truncf %38 : vector<8x8xf32> to vector<8x8xbf16>
    %c0_32 = arith.constant 0 : index
    %c0_33 = arith.constant 0 : index
    %40 = vector.load %arg14[%c0_32, %c0_33] : memref<8x32xbf16, #tpu.memory_space<vmem>>, vector<8x8xbf16>
    tpu.vector_store %arg14[%c0_32, %c0_33], %39 {strides = array<i32>} : memref<8x32xbf16, #tpu.memory_space<vmem>>, vector<8x8xbf16>,
    %c0_34 = arith.constant 0 : index
    %c8 = arith.constant 8 : index
    %41 = vector.load %arg11[%c0_34, %c8] : memref<8x32xbf16, #tpu.memory_space<vmem>>, vector<8x8xbf16>
    %c0_35 = arith.constant 0 : index
    %c8_36 = arith.constant 8 : index
    %42 = vector.load %arg12[%c0_35, %c8_36] : memref<8x32xbf16, #tpu.memory_space<vmem>>, vector<8x8xbf16>
    %c0_37 = arith.constant 0 : index
    %c8_38 = arith.constant 8 : index
    %43 = vector.load %arg13[%c0_37, %c8_38] : memref<8x32xbf16, #tpu.memory_space<vmem>>, vector<8x8xbf16>
    %cst_39 = arith.constant dense<0.000000e+00> : vector<8x8xf32>
    %44 = tpu.matmul %41, %42, %cst_39 {dimension_numbers = #tpu.dot_dimension_numbers<[1], [1], [0], [0], [0, 0, 1, 0], [], []>} : vector<8x8xbf16>, vector<8x8xbf16>, vector<8x8xf32> -> vector<8x8xf32>
    %cst_40 = arith.constant dense<0xFF800000> : vector<8xf32>
    %45 = vector.multi_reduction <maximumf>, %44, %cst_40 [1] : vector<8x8xf32> to vector<8xf32>
    %46 = vector.shape_cast %45 : vector<8xf32> to vector<8x1xf32>
    %47 = vector.broadcast %46 : vector<8x1xf32> to vector<8x8xf32>
    %48 = arith.subf %44, %47 : vector<8x8xf32>
    %49 = math.exp %48 : vector<8x8xf32>
    %cst_41 = arith.constant dense<0.000000e+00> : vector<8xf32>
    %50 = vector.multi_reduction <add>, %49, %cst_41 [1] : vector<8x8xf32> to vector<8xf32>
    %51 = vector.shape_cast %50 : vector<8xf32> to vector<8x1xf32>
    %52 = arith.truncf %49 : vector<8x8xf32> to vector<8x8xbf16>
    %cst_42 = arith.constant dense<0.000000e+00> : vector<8x8xf32>
    %53 = tpu.matmul %52, %43, %cst_42 {dimension_numbers = #tpu.dot_dimension_numbers<[1], [0], [0], [1], [0, 0, 1, 1], [], []>} : vector<8x8xbf16>, vector<8x8xbf16>, vector<8x8xf32> -> vector<8x8xf32>
    %54 = tpu.reciprocal %51 {approx = true} : vector<8x1xf32> -> vector<8x1xf32>
    %55 = vector.broadcast %54 : vector<8x1xf32> to vector<8x8xf32>
    %56 = arith.mulf %53, %55 : vector<8x8xf32>
    %57 = arith.truncf %56 : vector<8x8xf32> to vector<8x8xbf16>
    %c0_43 = arith.constant 0 : index
    %c8_44 = arith.constant 8 : index
    %58 = vector.load %arg14[%c0_43, %c8_44] : memref<8x32xbf16, #tpu.memory_space<vmem>>, vector<8x8xbf16>
    tpu.vector_store %arg14[%c0_43, %c8_44], %57 {strides = array<i32>} : memref<8x32xbf16, #tpu.memory_space<vmem>>, vector<8x8xbf16>,
    %c0_45 = arith.constant 0 : index
    %c16 = arith.constant 16 : index
    %59 = vector.load %arg11[%c0_45, %c16] : memref<8x32xbf16, #tpu.memory_space<vmem>>, vector<8x8xbf16>
    %c0_46 = arith.constant 0 : index
    %c16_47 = arith.constant 16 : index
    %60 = vector.load %arg12[%c0_46, %c16_47] : memref<8x32xbf16, #tpu.memory_space<vmem>>, vector<8x8xbf16>
    %c0_48 = arith.constant 0 : index
    %c16_49 = arith.constant 16 : index
    %61 = vector.load %arg13[%c0_48, %c16_49] : memref<8x32xbf16, #tpu.memory_space<vmem>>, vector<8x8xbf16>
    %cst_50 = arith.constant dense<0.000000e+00> : vector<8x8xf32>
    %62 = tpu.matmul %59, %60, %cst_50 {dimension_numbers = #tpu.dot_dimension_numbers<[1], [1], [0], [0], [0, 0, 1, 0], [], []>} : vector<8x8xbf16>, vector<8x8xbf16>, vector<8x8xf32> -> vector<8x8xf32>
    %cst_51 = arith.constant dense<0xFF800000> : vector<8xf32>
    %63 = vector.multi_reduction <maximumf>, %62, %cst_51 [1] : vector<8x8xf32> to vector<8xf32>
    %64 = vector.shape_cast %63 : vector<8xf32> to vector<8x1xf32>
    %65 = vector.broadcast %64 : vector<8x1xf32> to vector<8x8xf32>
    %66 = arith.subf %62, %65 : vector<8x8xf32>
    %67 = math.exp %66 : vector<8x8xf32>
    %cst_52 = arith.constant dense<0.000000e+00> : vector<8xf32>
    %68 = vector.multi_reduction <add>, %67, %cst_52 [1] : vector<8x8xf32> to vector<8xf32>
    %69 = vector.shape_cast %68 : vector<8xf32> to vector<8x1xf32>
    %70 = arith.truncf %67 : vector<8x8xf32> to vector<8x8xbf16>
    %cst_53 = arith.constant dense<0.000000e+00> : vector<8x8xf32>
    %71 = tpu.matmul %70, %61, %cst_53 {dimension_numbers = #tpu.dot_dimension_numbers<[1], [0], [0], [1], [0, 0, 1, 1], [], []>} : vector<8x8xbf16>, vector<8x8xbf16>, vector<8x8xf32> -> vector<8x8xf32>
    %72 = tpu.reciprocal %69 {approx = true} : vector<8x1xf32> -> vector<8x1xf32>
    %73 = vector.broadcast %72 : vector<8x1xf32> to vector<8x8xf32>
    %74 = arith.mulf %71, %73 : vector<8x8xf32>
    %75 = arith.truncf %74 : vector<8x8xf32> to vector<8x8xbf16>
    %c0_54 = arith.constant 0 : index
    %c16_55 = arith.constant 16 : index
    %76 = vector.load %arg14[%c0_54, %c16_55] : memref<8x32xbf16, #tpu.memory_space<vmem>>, vector<8x8xbf16>
    tpu.vector_store %arg14[%c0_54, %c16_55], %75 {strides = array<i32>} : memref<8x32xbf16, #tpu.memory_space<vmem>>, vector<8x8xbf16>,
    %c0_56 = arith.constant 0 : index
    %c24 = arith.constant 24 : index
    %77 = vector.load %arg11[%c0_56, %c24] : memref<8x32xbf16, #tpu.memory_space<vmem>>, vector<8x8xbf16>
    %c0_57 = arith.constant 0 : index
    %c24_58 = arith.constant 24 : index
    %78 = vector.load %arg12[%c0_57, %c24_58] : memref<8x32xbf16, #tpu.memory_space<vmem>>, vector<8x8xbf16>
    %c0_59 = arith.constant 0 : index
    %c24_60 = arith.constant 24 : index
    %79 = vector.load %arg13[%c0_59, %c24_60] : memref<8x32xbf16, #tpu.memory_space<vmem>>, vector<8x8xbf16>
    %cst_61 = arith.constant dense<0.000000e+00> : vector<8x8xf32>
    %80 = tpu.matmul %77, %78, %cst_61 {dimension_numbers = #tpu.dot_dimension_numbers<[1], [1], [0], [0], [0, 0, 1, 0], [], []>} : vector<8x8xbf16>, vector<8x8xbf16>, vector<8x8xf32> -> vector<8x8xf32>
    %cst_62 = arith.constant dense<0xFF800000> : vector<8xf32>
    %81 = vector.multi_reduction <maximumf>, %80, %cst_62 [1] : vector<8x8xf32> to vector<8xf32>
    %82 = vector.shape_cast %81 : vector<8xf32> to vector<8x1xf32>
    %83 = vector.broadcast %82 : vector<8x1xf32> to vector<8x8xf32>
    %84 = arith.subf %80, %83 : vector<8x8xf32>
    %85 = math.exp %84 : vector<8x8xf32>
    %cst_63 = arith.constant dense<0.000000e+00> : vector<8xf32>
    %86 = vector.multi_reduction <add>, %85, %cst_63 [1] : vector<8x8xf32> to vector<8xf32>
    %87 = vector.shape_cast %86 : vector<8xf32> to vector<8x1xf32>
    %88 = arith.truncf %85 : vector<8x8xf32> to vector<8x8xbf16>
    %cst_64 = arith.constant dense<0.000000e+00> : vector<8x8xf32>
    %89 = tpu.matmul %88, %79, %cst_64 {dimension_numbers = #tpu.dot_dimension_numbers<[1], [0], [0], [1], [0, 0, 1, 1], [], []>} : vector<8x8xbf16>, vector<8x8xbf16>, vector<8x8xf32> -> vector<8x8xf32>
    %90 = tpu.reciprocal %87 {approx = true} : vector<8x1xf32> -> vector<8x1xf32>
    %91 = vector.broadcast %90 : vector<8x1xf32> to vector<8x8xf32>
    %92 = arith.mulf %89, %91 : vector<8x8xf32>
    %93 = arith.truncf %92 : vector<8x8xf32> to vector<8x8xbf16>
    %c0_65 = arith.constant 0 : index
    %c24_66 = arith.constant 24 : index
    %94 = vector.load %arg14[%c0_65, %c24_66] : memref<8x32xbf16, #tpu.memory_space<vmem>>, vector<8x8xbf16>
    tpu.vector_store %arg14[%c0_65, %c24_66], %93 {strides = array<i32>} : memref<8x32xbf16, #tpu.memory_space<vmem>>, vector<8x8xbf16>,
    %c0_67 = arith.constant 0 : index
    %c0_68 = arith.constant 0 : index
    %95 = vector.load %arg14[%c0_67, %c0_68] : memref<8x32xbf16, #tpu.memory_space<vmem>>, vector<8x32xbf16>
    %c0_69 = arith.constant 0 : index
    %c0_70 = arith.constant 0 : index
    %96 = vector.load %arg8[%c0_69, %c0_70] : memref<32x32xbf16, #tpu.memory_space<vmem>>, vector<32x32xbf16>
    %cst_71 = arith.constant dense<0.000000e+00> : vector<8x32xf32>
    %97 = tpu.matmul %95, %96, %cst_71 {dimension_numbers = #tpu.dot_dimension_numbers<[1], [0], [0], [1], [0, 0, 1, 1], [], []>} : vector<8x32xbf16>, vector<32x32xbf16>, vector<8x32xf32> -> vector<8x32xf32>
    %c0_72 = arith.constant 0 : index
    %c0_73 = arith.constant 0 : index
    %98 = vector.load %arg9[%c0_72, %c0_73] : memref<1x32xf32, #tpu.memory_space<vmem>>, vector<1x32xf32>
    %99 = vector.broadcast %98 : vector<1x32xf32> to vector<8x32xf32>
    %100 = arith.addf %97, %99 : vector<8x32xf32>
    %c0_74 = arith.constant 0 : index
    %c0_75 = arith.constant 0 : index
    %c0_76 = arith.constant 0 : index
    %101 = vector.load %arg10[%c0_74, %c0_75, %c0_76] : memref<1x8x32xf32, #tpu.memory_space<vmem>>, vector<1x8x32xf32>
    %102 = vector.shape_cast %101 : vector<1x8x32xf32> to vector<8x32xf32>
    %103 = vector.shape_cast %100 : vector<8x32xf32> to vector<1x8x32xf32>
    tpu.vector_store %arg10[%c0_74, %c0_75, %c0_76], %103 {strides = array<i32>} : memref<1x8x32xf32, #tpu.memory_space<vmem>>, vector<1x8x32xf32>,
    return
  }
  func.func @transform_0(%arg0: i32) -> (i32, i32, i32) {
    %c0_i32 = arith.constant 0 : i32
    %c0_i32_0 = arith.constant 0 : i32
    %c0_i32_1 = arith.constant 0 : i32
    return %arg0, %c0_i32, %c0_i32_0 : i32, i32, i32
  }
  func.func @transform_1(%arg0: i32) -> (i32, i32) {
    %c0_i32 = arith.constant 0 : i32
    %c0_i32_0 = arith.constant 0 : i32
    %c0_i32_1 = arith.constant 0 : i32
    return %c0_i32, %c0_i32_0 : i32, i32
  }
  func.func @transform_2(%arg0: i32) -> (i32, i32) {
    %c0_i32 = arith.constant 0 : i32
    %c0_i32_0 = arith.constant 0 : i32
    %c0_i32_1 = arith.constant 0 : i32
    return %c0_i32, %c0_i32_0 : i32, i32
  }
  func.func @transform_3(%arg0: i32) -> (i32, i32) {
    %c0_i32 = arith.constant 0 : i32
    %c0_i32_0 = arith.constant 0 : i32
    %c0_i32_1 = arith.constant 0 : i32
    return %c0_i32, %c0_i32_0 : i32, i32
  }
  func.func @transform_4(%arg0: i32) -> (i32, i32) {
    %c0_i32 = arith.constant 0 : i32
    %c0_i32_0 = arith.constant 0 : i32
    %c0_i32_1 = arith.constant 0 : i32
    return %c0_i32, %c0_i32_0 : i32, i32
  }
  func.func @transform_5(%arg0: i32) -> (i32, i32) {
    %c0_i32 = arith.constant 0 : i32
    %c0_i32_0 = arith.constant 0 : i32
    %c0_i32_1 = arith.constant 0 : i32
    return %c0_i32, %c0_i32_0 : i32, i32
  }
  func.func @transform_6(%arg0: i32) -> (i32, i32) {
    %c0_i32 = arith.constant 0 : i32
    %c0_i32_0 = arith.constant 0 : i32
    %c0_i32_1 = arith.constant 0 : i32
    return %c0_i32, %c0_i32_0 : i32, i32
  }
  func.func @transform_7(%arg0: i32) -> (i32, i32) {
    %c0_i32 = arith.constant 0 : i32
    %c0_i32_0 = arith.constant 0 : i32
    %c0_i32_1 = arith.constant 0 : i32
    return %c0_i32, %c0_i32_0 : i32, i32
  }
  func.func @transform_8(%arg0: i32) -> (i32, i32) {
    %c0_i32 = arith.constant 0 : i32
    %c0_i32_0 = arith.constant 0 : i32
    %c0_i32_1 = arith.constant 0 : i32
    return %c0_i32, %c0_i32_0 : i32, i32
  }
  func.func @transform_9(%arg0: i32) -> (i32, i32, i32) {
    %c0_i32 = arith.constant 0 : i32
    %c0_i32_0 = arith.constant 0 : i32
    %c0_i32_1 = arith.constant 0 : i32
    return %arg0, %c0_i32, %c0_i32_0 : i32, i32, i32
  }
}

</mosaic_0001>

<llo_original>
// kernel: tpu_custom_call.1
$region0: #{tpu_custom_call.1}
  #allocation0 [shape = 'u32[]', space=smem, size = 0x4, offset = 0x4, fixed_abs, tag = 'smem constant byte address 0x4 - core index']
  #allocation1 [shape = 'u32[72,128]{1,0:T(1,128)}', space=vmem, size = 0x9000, scoped, tag = 'internal scratch']
  #allocation2 [shape = 'bf16[8,32]{1,0:T(8,128)(2,1)}', space=vmem, size = 0x800, scoped, tag = 'scratch operand']
  #allocation3 [shape = 'bf16[8,32]{1,0:T(8,128)(2,1)}', space=vmem, size = 0x800, scoped, tag = 'scratch operand']
  #allocation4 [shape = 'bf16[8,32]{1,0:T(8,128)(2,1)}', space=vmem, size = 0x800, scoped, tag = 'scratch operand']
  #allocation5 [shape = 'bf16[8,32]{1,0:T(8,128)(2,1)}', space=vmem, size = 0x800, scoped, tag = 'scratch operand']
  %s0 = inlined_call_operand.hbm [shape: bf16[2,8,32], index: 0, kind: input, shape index: {}]
  %s1 = inlined_call_operand.hbm [shape: bf16[32,32], index: 1, kind: input, shape index: {}]
  %s2 = inlined_call_operand.vmem [shape: f32[1,32], index: 2, kind: input, shape index: {}]
  %s3 = inlined_call_operand.hbm [shape: bf16[32,32], index: 3, kind: input, shape index: {}]
  %s4 = inlined_call_operand.vmem [shape: f32[1,32], index: 4, kind: input, shape index: {}]
  %s5 = inlined_call_operand.hbm [shape: bf16[32,32], index: 5, kind: input, shape index: {}]
  %s6 = inlined_call_operand.vmem [shape: f32[1,32], index: 6, kind: input, shape index: {}]
  %s7 = inlined_call_operand.hbm [shape: bf16[32,32], index: 7, kind: input, shape index: {}]
  %s8 = inlined_call_operand.vmem [shape: f32[1,32], index: 8, kind: input, shape index: {}]
  %s9 = inlined_call_operand.hbm [shape: f32[2,8,32], index: 9, kind: output, shape index: {}]
  %s10 = sld [smem:[#allocation0]]
  $region89: #{tpu_custom_call.1} parent=0
    _
  %s12 = ssub.s32 1, %s10
  %s13 = scalar_select 0, %s12, %s10
  $region1: #{tpu_custom_call.1} parent=0
    #allocation6 [shape = 'u8[4096]{0}', space=vmem, size = 0x1000, scoped, tag = 'input window, operand 0']
    #allocation7 [shape = 's32[2]{0}', space=sflag, size = 0x8, scoped, tag = 'scoped memory for tpu_custom_call.1']
    #allocation8 [shape = 's32[2]{0}', space=sflag, size = 0x8, scoped, tag = 'scoped memory for tpu_custom_call.1']
    #allocation9 [shape = 'u8[8192]{0}', space=vmem, size = 0x2000, scoped, tag = 'input window, operand 1, single buffered']
    #allocation10 [shape = 's32[1]{0}', space=sflag, size = 0x4, scoped, tag = 'scoped memory for tpu_custom_call.1']
    #allocation11 [shape = 'u8[8192]{0}', space=vmem, size = 0x2000, scoped, tag = 'input window, operand 3, single buffered']
    #allocation12 [shape = 'u8[8192]{0}', space=vmem, size = 0x2000, scoped, tag = 'input window, operand 5, single buffered']
    #allocation13 [shape = 's32[1]{0}', space=sflag, size = 0x4, scoped, tag = 'scoped memory for tpu_custom_call.1']
    #allocation14 [shape = 'u8[8192]{0}', space=vmem, size = 0x2000, scoped, tag = 'input window, operand 7, single buffered']
    #allocation15 [shape = 'u8[8192]{0}', space=vmem, size = 0x2000, scoped, tag = 'output window, operand 0']
    %14 = vsyncpa [#allocation7], 0
    %s15 = scalar_lea.sflag [#allocation7], 1
    %16 = vsyncpa %s15, 0
    %17 = vsyncpa [#allocation10], 0
    %18 = vsyncpa [#allocation13], 0
    %19 = vsyncpa [#allocation8], 0
    %s20 = scalar_lea.sflag [#allocation8], 1
    %21 = vsyncpa %s20, 0
    loop: start=0, step=1, limit=4
    $region2: #{tpu_custom_call.1} parent=1 // loop_pre_header
      _
    $region3: #{tpu_custom_call.1} parent=1 // loop_header
      %s23 = sphi 0, %s27
      %p24 = scmp.ge.s32.totalorder %s23, 4
      %s33 = sphi 0, %s35
      %s36 = sphi 0, %s33
      %s37 = sphi 0, %s36
      %s53 = sphi 0, %s37
      %s57 = sphi 0, %s57
      %s59 = sphi 0, %s57
      %s60 = sphi 0, %s59
      %s74 = sphi 0, %s60
      %s78 = sphi 0, %s78
      %s80 = sphi 0, %s78
      %s81 = sphi 0, %s80
      %s95 = sphi 0, %s81
      %s99 = sphi 0, %s99
      %s101 = sphi 0, %s99
      %s102 = sphi 0, %s101
      %s116 = sphi 0, %s102
      %s120 = sphi 0, %s120
      %s122 = sphi 0, %s120
      %s123 = sphi 0, %s122
      %s137 = sphi 0, %s123
      %s141 = sphi 0, %s141
      %s143 = sphi 0, %s141
      %s144 = sphi 0, %s143
      %s158 = sphi 0, %s144
      %s162 = sphi 0, %s162
      %s164 = sphi 0, %s162
      %s165 = sphi 0, %s164
      %s179 = sphi 0, %s165
      %s183 = sphi 0, %s183
      %s185 = sphi 0, %s183
      %s186 = sphi 0, %s185
      %s200 = sphi 0, %s186
      %s204 = sphi 0, %s204
      %s206 = sphi 0, %s204
      %s207 = sphi 0, %s206
      %s221 = sphi 0, %s207
      %s227 = sphi 0, %s229
      %s230 = sphi 0, %s227
      %s231 = sphi 0, %s230
      %s247 = sphi 0, %s231
    $region4: #{tpu_custom_call.1} parent=1 // loop_header_branch
      %26 = sbr.rel (%p24) target = $region8
    $region5: #{tpu_custom_call.1} parent=1 // loop_body
      %s28 = ssub.s32 %s23, 1
      %s29 = ssub.s32 %s23, 2
      %s30 = sadd.s32 %s23, 1
      %s31 = ssub.s32 %s23, %s30
      %p32 = scmp.eq.s32.totalorder %s31, 0
      %s34 = sadd.s32 %s33, 1
      %s35 = scalar_select %p32, %s33, %s34
      %p38 = pneg %p32
      %p39 = scmp.eq.s32.totalorder %s23, 1
      %p40 = por %p38, %p39
      %p41 = scmp.ne.s32.totalorder %s33, %s36
      %p42 = scmp.eq.s32.totalorder %s23, 0
      %p43 = por %p41, %p42
      %p44 = scmp.ne.s32.totalorder %s33, %s36
      %p45 = scmp.eq.s32.totalorder %s28, 1
      %p46 = por %p44, %p45
      %p47 = scmp.ne.s32.totalorder %s36, %s37
      %p48 = scmp.eq.s32.totalorder %s28, 0
      %p49 = por %p47, %p48
      %p50 = scmp.ne.s32.totalorder %s36, %s37
      %p51 = scmp.eq.s32.totalorder %s29, 1
      %p52 = por %p50, %p51
      %p54 = scmp.ne.s32.totalorder %s37, %s53
      %p55 = scmp.eq.s32.totalorder %s29, 0
      %p56 = por %p54, %p55
      %s58 = sadd.s32 %s57, 1
      %p61 = scmp.eq.s32.totalorder %s23, 1
      %p62 = scmp.ne.s32.totalorder %s57, %s59
      %p63 = scmp.eq.s32.totalorder %s23, 0
      %p64 = por %p62, %p63
      %p65 = scmp.ne.s32.totalorder %s57, %s59
      %p66 = scmp.eq.s32.totalorder %s28, 1
      %p67 = por %p65, %p66
      %p68 = scmp.ne.s32.totalorder %s59, %s60
      %p69 = scmp.eq.s32.totalorder %s28, 0
      %p70 = por %p68, %p69
      %p71 = scmp.ne.s32.totalorder %s59, %s60
      %p72 = scmp.eq.s32.totalorder %s29, 1
      %p73 = por %p71, %p72
      %p75 = scmp.ne.s32.totalorder %s60, %s74
      %p76 = scmp.eq.s32.totalorder %s29, 0
      %p77 = por %p75, %p76
      %s79 = sadd.s32 %s78, 1
      %p82 = scmp.eq.s32.totalorder %s23, 1
      %p83 = scmp.ne.s32.totalorder %s78, %s80
      %p84 = scmp.eq.s32.totalorder %s23, 0
      %p85 = por %p83, %p84
      %p86 = scmp.ne.s32.totalorder %s78, %s80
      %p87 = scmp.eq.s32.totalorder %s28, 1
      %p88 = por %p86, %p87
      %p89 = scmp.ne.s32.totalorder %s80, %s81
      %p90 = scmp.eq.s32.totalorder %s28, 0
      %p91 = por %p89, %p90
      %p92 = scmp.ne.s32.totalorder %s80, %s81
      %p93 = scmp.eq.s32.totalorder %s29, 1
      %p94 = por %p92, %p93
      %p96 = scmp.ne.s32.totalorder %s81, %s95
      %p97 = scmp.eq.s32.totalorder %s29, 0
      %p98 = por %p96, %p97
      %s100 = sadd.s32 %s99, 1
      %p103 = scmp.eq.s32.totalorder %s23, 1
      %p104 = scmp.ne.s32.totalorder %s99, %s101
      %p105 = scmp.eq.s32.totalorder %s23, 0
      %p106 = por %p104, %p105
      %p107 = scmp.ne.s32.totalorder %s99, %s101
      %p108 = scmp.eq.s32.totalorder %s28, 1
      %p109 = por %p107, %p108
      %p110 = scmp.ne.s32.totalorder %s101, %s102
      %p111 = scmp.eq.s32.totalorder %s28, 0
      %p112 = por %p110, %p111
      %p113 = scmp.ne.s32.totalorder %s101, %s102
      %p114 = scmp.eq.s32.totalorder %s29, 1
      %p115 = por %p113, %p114
      %p117 = scmp.ne.s32.totalorder %s102, %s116
      %p118 = scmp.eq.s32.totalorder %s29, 0
      %p119 = por %p117, %p118
      %s121 = sadd.s32 %s120, 1
      %p124 = scmp.eq.s32.totalorder %s23, 1
      %p125 = scmp.ne.s32.totalorder %s120, %s122
      %p126 = scmp.eq.s32.totalorder %s23, 0
      %p127 = por %p125, %p126
      %p128 = scmp.ne.s32.totalorder %s120, %s122
      %p129 = scmp.eq.s32.totalorder %s28, 1
      %p130 = por %p128, %p129
      %p131 = scmp.ne.s32.totalorder %s122, %s123
      %p132 = scmp.eq.s32.totalorder %s28, 0
      %p133 = por %p131, %p132
      %p134 = scmp.ne.s32.totalorder %s122, %s123
      %p135 = scmp.eq.s32.totalorder %s29, 1
      %p136 = por %p134, %p135
      %p138 = scmp.ne.s32.totalorder %s123, %s137
      %p139 = scmp.eq.s32.totalorder %s29, 0
      %p140 = por %p138, %p139
      %s142 = sadd.s32 %s141, 1
      %p145 = scmp.eq.s32.totalorder %s23, 1
      %p146 = scmp.ne.s32.totalorder %s141, %s143
      %p147 = scmp.eq.s32.totalorder %s23, 0
      %p148 = por %p146, %p147
      %p149 = scmp.ne.s32.totalorder %s141, %s143
      %p150 = scmp.eq.s32.totalorder %s28, 1
      %p151 = por %p149, %p150
      %p152 = scmp.ne.s32.totalorder %s143, %s144
      %p153 = scmp.eq.s32.totalorder %s28, 0
      %p154 = por %p152, %p153
      %p155 = scmp.ne.s32.totalorder %s143, %s144
      %p156 = scmp.eq.s32.totalorder %s29, 1
      %p157 = por %p155, %p156
      %p159 = scmp.ne.s32.totalorder %s144, %s158
      %p160 = scmp.eq.s32.totalorder %s29, 0
      %p161 = por %p159, %p160
      %s163 = sadd.s32 %s162, 1
      %p166 = scmp.eq.s32.totalorder %s23, 1
      %p167 = scmp.ne.s32.totalorder %s162, %s164
      %p168 = scmp.eq.s32.totalorder %s23, 0
      %p169 = por %p167, %p168
      %p170 = scmp.ne.s32.totalorder %s162, %s164
      %p171 = scmp.eq.s32.totalorder %s28, 1
      %p172 = por %p170, %p171
      %p173 = scmp.ne.s32.totalorder %s164, %s165
      %p174 = scmp.eq.s32.totalorder %s28, 0
      %p175 = por %p173, %p174
      %p176 = scmp.ne.s32.totalorder %s164, %s165
      %p177 = scmp.eq.s32.totalorder %s29, 1
      %p178 = por %p176, %p177
      %p180 = scmp.ne.s32.totalorder %s165, %s179
      %p181 = scmp.eq.s32.totalorder %s29, 0
      %p182 = por %p180, %p181
      %s184 = sadd.s32 %s183, 1
      %p187 = scmp.eq.s32.totalorder %s23, 1
      %p188 = scmp.ne.s32.totalorder %s183, %s185
      %p189 = scmp.eq.s32.totalorder %s23, 0
      %p190 = por %p188, %p189
      %p191 = scmp.ne.s32.totalorder %s183, %s185
      %p192 = scmp.eq.s32.totalorder %s28, 1
      %p193 = por %p191, %p192
      %p194 = scmp.ne.s32.totalorder %s185, %s186
      %p195 = scmp.eq.s32.totalorder %s28, 0
      %p196 = por %p194, %p195
      %p197 = scmp.ne.s32.totalorder %s185, %s186
      %p198 = scmp.eq.s32.totalorder %s29, 1
      %p199 = por %p197, %p198
      %p201 = scmp.ne.s32.totalorder %s186, %s200
      %p202 = scmp.eq.s32.totalorder %s29, 0
      %p203 = por %p201, %p202
      %s205 = sadd.s32 %s204, 1
      %p208 = scmp.eq.s32.totalorder %s23, 1
      %p209 = scmp.ne.s32.totalorder %s204, %s206
      %p210 = scmp.eq.s32.totalorder %s23, 0
      %p211 = por %p209, %p210
      %p212 = scmp.ne.s32.totalorder %s204, %s206
      %p213 = scmp.eq.s32.totalorder %s28, 1
      %p214 = por %p212, %p213
      %p215 = scmp.ne.s32.totalorder %s206, %s207
      %p216 = scmp.eq.s32.totalorder %s28, 0
      %p217 = por %p215, %p216
      %p218 = scmp.ne.s32.totalorder %s206, %s207
      %p219 = scmp.eq.s32.totalorder %s29, 1
      %p220 = por %p218, %p219
      %p222 = scmp.ne.s32.totalorder %s207, %s221
      %p223 = scmp.eq.s32.totalorder %s29, 0
      %p224 = por %p222, %p223
      %s225 = ssub.s32 %s23, %s30
      %p226 = scmp.eq.s32.totalorder %s225, 0
      %s228 = sadd.s32 %s227, 1
      %s229 = scalar_select %p226, %s227, %s228
      %p232 = pneg %p226
      %p233 = scmp.eq.s32.totalorder %s23, 1
      %p234 = por %p232, %p233
      %p235 = scmp.ne.s32.totalorder %s227, %s230
      %p236 = scmp.eq.s32.totalorder %s23, 0
      %p237 = por %p235, %p236
      %p238 = scmp.ne.s32.totalorder %s227, %s230
      %p239 = scmp.eq.s32.totalorder %s28, 1
      %p240 = por %p238, %p239
      %p241 = scmp.ne.s32.totalorder %s230, %s231
      %p242 = scmp.eq.s32.totalorder %s28, 0
      %p243 = por %p241, %p242
      %p244 = scmp.ne.s32.totalorder %s230, %s231
      %p245 = scmp.eq.s32.totalorder %s29, 1
      %p246 = por %p244, %p245
      %p248 = scmp.ne.s32.totalorder %s231, %s247
      %p249 = scmp.eq.s32.totalorder %s29, 0
      %p250 = por %p248, %p249
      %p251 = scmp.le.s32.totalorder 1, %s23
      %p252 = scmp.lt.s32.totalorder %s23, 3
      %p253 = pnand %p251, %p252
      %p254 = pneg %p253
      // Predicated region
      $region9: #{tpu_custom_call.1} parent=5 // pred_check
        _
      $region10: #{tpu_custom_call.1} parent=5 // pred_check_branch
        %256 = sbr.rel (%p253) target = $region12
      $region11: #{tpu_custom_call.1} parent=5 // pred_region
        %s257 = ssub.s32 %s23, 1
        // Predicated region
        $region13: #{tpu_custom_call.1} parent=11 // pred_check
          %p258 = pneg %p70
        $region14: #{tpu_custom_call.1} parent=11 // pred_check_branch
          %260 = sbr.rel (%p258) target = $region16
        $region15: #{tpu_custom_call.1} parent=11 // pred_region
          %262 = vsyncadd [#allocation10], 0
          %s263 = sshll.u32 %s1, 4
          %s264 = int_to_ptr.hbm [resolvable:$true] %s263
          %s265 = sshll.u32 [#allocation9], 4
          %s266 = int_to_ptr.vmem [resolvable:$true] %s265
          %271 = dma.hbm_to_vmem [thread:$0]  %s264, 256, %s266, [#allocation10], 64, 64, 4
        $region16: #{tpu_custom_call.1} parent=11 // pred_fallthru
          _
        // Predicated region
        $region17: #{tpu_custom_call.1} parent=11 // pred_check
          %p272 = pneg %p91
        $region18: #{tpu_custom_call.1} parent=11 // pred_check_branch
          %274 = sbr.rel (%p272) target = $region20
        $region19: #{tpu_custom_call.1} parent=11 // pred_region
          _
        $region20: #{tpu_custom_call.1} parent=11 // pred_fallthru
          _
        // Predicated region
        $region21: #{tpu_custom_call.1} parent=11 // pred_check
          %p275 = pneg %p112
        $region22: #{tpu_custom_call.1} parent=11 // pred_check_branch
          %277 = sbr.rel (%p275) target = $region24
        $region23: #{tpu_custom_call.1} parent=11 // pred_region
          %279 = vsyncadd [#allocation10], 0
          %s280 = sshll.u32 %s3, 4
          %s281 = int_to_ptr.hbm [resolvable:$true] %s280
          %s282 = sshll.u32 [#allocation11], 4
          %s283 = int_to_ptr.vmem [resolvable:$true] %s282
          %288 = dma.hbm_to_vmem [thread:$0]  %s281, 256, %s283, [#allocation10], 64, 64, 4
        $region24: #{tpu_custom_call.1} parent=11 // pred_fallthru
          _
        // Predicated region
        $region25: #{tpu_custom_call.1} parent=11 // pred_check
          %p289 = pneg %p133
        $region26: #{tpu_custom_call.1} parent=11 // pred_check_branch
          %291 = sbr.rel (%p289) target = $region28
        $region27: #{tpu_custom_call.1} parent=11 // pred_region
          _
        $region28: #{tpu_custom_call.1} parent=11 // pred_fallthru
          _
        // Predicated region
        $region29: #{tpu_custom_call.1} parent=11 // pred_check
          %p292 = pneg %p154
        $region30: #{tpu_custom_call.1} parent=11 // pred_check_branch
          %294 = sbr.rel (%p292) target = $region32
        $region31: #{tpu_custom_call.1} parent=11 // pred_region
          %296 = vsyncadd [#allocation13], 0
          %s297 = sshll.u32 %s5, 4
          %s298 = int_to_ptr.hbm [resolvable:$true] %s297
          %s299 = sshll.u32 [#allocation12], 4
          %s300 = int_to_ptr.vmem [resolvable:$true] %s299
          %305 = dma.hbm_to_vmem [thread:$0]  %s298, 256, %s300, [#allocation13], 64, 64, 4
        $region32: #{tpu_custom_call.1} parent=11 // pred_fallthru
          _
        // Predicated region
        $region33: #{tpu_custom_call.1} parent=11 // pred_check
          %p306 = pneg %p175
        $region34: #{tpu_custom_call.1} parent=11 // pred_check_branch
          %308 = sbr.rel (%p306) target = $region36
        $region35: #{tpu_custom_call.1} parent=11 // pred_region
          _
        $region36: #{tpu_custom_call.1} parent=11 // pred_fallthru
          _
        // Predicated region
        $region37: #{tpu_custom_call.1} parent=11 // pred_check
          %p309 = pneg %p196
        $region38: #{tpu_custom_call.1} parent=11 // pred_check_branch
          %311 = sbr.rel (%p309) target = $region40
        $region39: #{tpu_custom_call.1} parent=11 // pred_region
          %313 = vsyncadd [#allocation13], 0
          %s314 = sshll.u32 %s7, 4
          %s315 = int_to_ptr.hbm [resolvable:$true] %s314
          %s316 = sshll.u32 [#allocation14], 4
          %s317 = int_to_ptr.vmem [resolvable:$true] %s316
          %322 = dma.hbm_to_vmem [thread:$0]  %s315, 256, %s317, [#allocation13], 64, 64, 4
        $region40: #{tpu_custom_call.1} parent=11 // pred_fallthru
          _
        // Predicated region
        $region41: #{tpu_custom_call.1} parent=11 // pred_check
          %p323 = pneg %p217
        $region42: #{tpu_custom_call.1} parent=11 // pred_check_branch
          %325 = sbr.rel (%p323) target = $region44
        $region43: #{tpu_custom_call.1} parent=11 // pred_region
          _
        $region44: #{tpu_custom_call.1} parent=11 // pred_fallthru
          _
      $region12: #{tpu_custom_call.1} parent=5 // pred_fallthru
        _
      %p326 = scmp.lt.s32.totalorder %s23, 2
      // Predicated region
      $region45: #{tpu_custom_call.1} parent=5 // pred_check
        %p327 = pneg %p326
      $region46: #{tpu_custom_call.1} parent=5 // pred_check_branch
        %329 = sbr.rel (%p327) target = $region48
      $region47: #{tpu_custom_call.1} parent=5 // pred_region
        // Predicated region
        $region49: #{tpu_custom_call.1} parent=47 // pred_check
          %p330 = pneg %p43
        $region50: #{tpu_custom_call.1} parent=47 // pred_check_branch
          %332 = sbr.rel (%p330) target = $region52
        $region51: #{tpu_custom_call.1} parent=47 // pred_region
          %s333 = sand.u32 %s33, 1
          %s334 = scalar_lea.sflag [#allocation7], %s333
          %s335 = sand.u32 %s33, 1
          %s336 = smul.addr %s335, 4
          %s337 = scalar_lea.vmem [#allocation6], %s336
          %339 = vsyncadd %s334, 0
          %s340 = smul.addr %s23, 4
          %s341 = scalar_lea.hbm %s0, %s340
          %s343 = sshll.u32 %s341, 4
          %s344 = int_to_ptr.hbm [resolvable:$true] %s343
          %s345 = sshll.u32 %s337, 4
          %s346 = int_to_ptr.vmem [resolvable:$true] %s345
          %348 = dma.hbm_to_vmem [thread:$0]  %s344, 64, %s346, %s334
        $region52: #{tpu_custom_call.1} parent=47 // pred_fallthru
          _
      $region48: #{tpu_custom_call.1} parent=5 // pred_fallthru
        _
      %p349 = scmp.le.s32.totalorder 1, %s23
      %p350 = scmp.lt.s32.totalorder %s23, 3
      %p351 = pnand %p349, %p350
      %p352 = pneg %p351
      // Predicated region
      $region53: #{tpu_custom_call.1} parent=5 // pred_check
        _
      $region54: #{tpu_custom_call.1} parent=5 // pred_check_branch
        %354 = sbr.rel (%p351) target = $region56
      $region55: #{tpu_custom_call.1} parent=5 // pred_region
        %s355 = ssub.s32 %s23, 1
        %s356 = sand.u32 %s36, 1
        %s357 = scalar_lea.sflag [#allocation7], %s356
        %s358 = sand.u32 %s36, 1
        %s359 = smul.addr %s358, 4
        %s360 = scalar_lea.vmem [#allocation6], %s359
        // Predicated region
        $region57: #{tpu_custom_call.1} parent=55 // pred_check
          %p361 = pneg %p49
        $region58: #{tpu_custom_call.1} parent=55 // pred_check_branch
          %363 = sbr.rel (%p361) target = $region60
        $region59: #{tpu_custom_call.1} parent=55 // pred_region
          %365 = dma.done %s357, 64
        $region60: #{tpu_custom_call.1} parent=55 // pred_fallthru
          _
        // Predicated region
        $region61: #{tpu_custom_call.1} parent=55 // pred_check
          %p366 = pneg %p70
        $region62: #{tpu_custom_call.1} parent=55 // pred_check_branch
          %368 = sbr.rel (%p366) target = $region64
        $region63: #{tpu_custom_call.1} parent=55 // pred_region
          %370 = dma.done [#allocation10], 256
        $region64: #{tpu_custom_call.1} parent=55 // pred_fallthru
          _
        // Predicated region
        $region65: #{tpu_custom_call.1} parent=55 // pred_check
          %p371 = pneg %p112
        $region66: #{tpu_custom_call.1} parent=55 // pred_check_branch
          %373 = sbr.rel (%p371) target = $region68
        $region67: #{tpu_custom_call.1} parent=55 // pred_region
          %375 = dma.done [#allocation10], 256
        $region68: #{tpu_custom_call.1} parent=55 // pred_fallthru
          _
        // Predicated region
        $region69: #{tpu_custom_call.1} parent=55 // pred_check
          %p376 = pneg %p154
        $region70: #{tpu_custom_call.1} parent=55 // pred_check_branch
          %378 = sbr.rel (%p376) target = $region72
        $region71: #{tpu_custom_call.1} parent=55 // pred_region
          %380 = dma.done [#allocation13], 256
        $region72: #{tpu_custom_call.1} parent=55 // pred_fallthru
          _
        // Predicated region
        $region73: #{tpu_custom_call.1} parent=55 // pred_check
          %p381 = pneg %p196
        $region74: #{tpu_custom_call.1} parent=55 // pred_check_branch
          %383 = sbr.rel (%p381) target = $region76
        $region75: #{tpu_custom_call.1} parent=55 // pred_region
          %385 = dma.done [#allocation13], 256
        $region76: #{tpu_custom_call.1} parent=55 // pred_fallthru
          _
        %s386 = sand.u32 %s36, 1
        %s387 = scalar_lea.sflag [#allocation7], %s386
        %s388 = sand.u32 %s36, 1
        %s389 = smul.addr %s388, 4
        %s390 = scalar_lea.vmem [#allocation6], %s389
        %p391 = pneg %p49
        %p392 = pneg %p46
        %p393 = pneg %p70
        %p394 = pneg %p67
        %p395 = pneg %p91
        %p396 = pneg %p88
        %p397 = pneg %p112
        %p398 = pneg %p109
        %p399 = pneg %p133
        %p400 = pneg %p130
        %p401 = pneg %p154
        %p402 = pneg %p151
        %p403 = pneg %p175
        %p404 = pneg %p172
        %p405 = pneg %p196
        %p406 = pneg %p193
        %p407 = pneg %p217
        %p408 = pneg %p214
        %p409 = pneg %p243
        %p410 = pneg %p240
        %s411 = sand.u32 %s230, 1
        %s412 = scalar_lea.sflag [#allocation8], %s411
        %s413 = sand.u32 %s230, 1
        %s414 = smul.addr %s413, 8
        %s415 = scalar_lea.vmem [#allocation15], %s414
        %v417 = vld [vmem:[%s360] sm:$0xf]
        %v418 = vld [vmem:[#allocation9] sm:$0xf]
        %v419 = vld [vmem:[#allocation9 + $0x4] sm:$0xf]
        %v420 = vld [vmem:[#allocation9 + $0x8] sm:$0xf]
        %v421 = vld [vmem:[#allocation9 + $0xc] sm:$0xf]
        %v422 = vld [vmem:[%s2] sm:$0x1]
        %v424 = vperm.slane %v422, 0
        %v430 = vunpack.c.l.b16 %v418
        %v431 = vunpack.c.l.b16 %v419
        %v432 = vunpack.c.l.b16 %v420
        %v433 = vunpack.c.l.b16 %v421
        %v434 = vpack.c.b16 %v431, %v430
        %v435 = vpack.c.b16 %v433, %v432
        %vm438 = vcmask 261120
        %v440 = vsel %vm438, %v417, 0
        %442 = vmatpush.bf16.msra.mxu0 0
        %443 = vmatpush.bf16.msra.mxu0 0
        %444 = vmatpush.bf16.msra.mxu0 0
        %445 = vmatpush.bf16.msra.mxu0 0
        %446 = vmatpush.bf16.msra.mxu0 0
        %447 = vmatpush.bf16.msra.mxu0 0
        %448 = vmatpush.bf16.msra.mxu0 %v435
        %449 = vmatpush.bf16.msra.mxu0 %v434
        %450 = vmatmul.bf16.gmra.mxu0 %v440
        %v451 = vpop.f32.mrf.mxu0
        %v452 = vadd.f32 %v424, %v451
        %v453 = vpop.f32.mrf.mxu0
        %454 = vdwg.mxu0
        %v455 = vpack.c.bf16 %v452, %v452
        %vm456 = vcmask 257024
        %457 = vst.msk [vmem:[#allocation2] sm:$0xf] %vm456, %v455
        %v458 = vld [vmem:[#allocation11] sm:$0xf]
        %v459 = vld [vmem:[#allocation11 + $0x4] sm:$0xf]
        %v460 = vld [vmem:[#allocation11 + $0x8] sm:$0xf]
        %v461 = vld [vmem:[#allocation11 + $0xc] sm:$0xf]
        %v462 = vld [vmem:[%s4] sm:$0x1]
        %v464 = vperm.slane %v462, 0
        %v470 = vunpack.c.l.b16 %v458
        %v471 = vunpack.c.l.b16 %v459
        %v472 = vunpack.c.l.b16 %v460
        %v473 = vunpack.c.l.b16 %v461
        %v474 = vpack.c.b16 %v471, %v470
        %v475 = vpack.c.b16 %v473, %v472
        %478 = vmatpush.bf16.msra.mxu0 0
        %479 = vmatpush.bf16.msra.mxu0 0
        %480 = vmatpush.bf16.msra.mxu0 0
        %481 = vmatpush.bf16.msra.mxu0 0
        %482 = vmatpush.bf16.msra.mxu0 0
        %483 = vmatpush.bf16.msra.mxu0 0
        %484 = vmatpush.bf16.msra.mxu0 %v475
        %485 = vmatpush.bf16.msra.mxu0 %v474
        %486 = vmatmul.bf16.gmra.mxu0 %v440
        %v487 = vpop.f32.mrf.mxu0
        %v488 = vadd.f32 %v464, %v487
        %v489 = vpop.f32.mrf.mxu0
        %490 = vdwg.mxu0
        %v491 = vpack.c.bf16 %v488, %v488
        %492 = vst.msk [vmem:[#allocation3] sm:$0xf] %vm456, %v491
        %v493 = vld [vmem:[#allocation12] sm:$0xf]
        %v494 = vld [vmem:[#allocation12 + $0x4] sm:$0xf]
        %v495 = vld [vmem:[#allocation12 + $0x8] sm:$0xf]
        %v496 = vld [vmem:[#allocation12 + $0xc] sm:$0xf]
        %v497 = vld [vmem:[%s6] sm:$0x1]
        %v499 = vperm.slane %v497, 0
        %v505 = vunpack.c.l.b16 %v493
        %v506 = vunpack.c.l.b16 %v494
        %v507 = vunpack.c.l.b16 %v495
        %v508 = vunpack.c.l.b16 %v496
        %v509 = vpack.c.b16 %v506, %v505
        %v510 = vpack.c.b16 %v508, %v507
        %513 = vmatpush.bf16.msra.mxu0 0
        %514 = vmatpush.bf16.msra.mxu0 0
        %515 = vmatpush.bf16.msra.mxu0 0
        %516 = vmatpush.bf16.msra.mxu0 0
        %517 = vmatpush.bf16.msra.mxu0 0
        %518 = vmatpush.bf16.msra.mxu0 0
        %519 = vmatpush.bf16.msra.mxu0 %v510
        %520 = vmatpush.bf16.msra.mxu0 %v509
        %521 = vmatmul.bf16.gmra.mxu0 %v440
        %v522 = vpop.f32.mrf.mxu0
        %v523 = vadd.f32 %v499, %v522
        %v524 = vpop.f32.mrf.mxu0
        %525 = vdwg.mxu0
        %v526 = vpack.c.bf16 %v523, %v523
        %527 = vst.msk [vmem:[#allocation4] sm:$0xf] %vm456, %v526
        %v528 = vld [vmem:[#allocation2] sm:$0xf]
        %v529 = vld [vmem:[#allocation3] sm:$0xf]
        %v530 = vld [vmem:[#allocation4] sm:$0xf]
        %vm531 = vcmask 64512
        %v533 = vsel %vm531, %v528, 0
        %v536 = vsel %vm531, %v529, 0
        %538 = vmatpush.bf16.xpose.msra.mxu0 0
        %539 = vmatpush.bf16.xpose.msra.mxu0 0
        %540 = vmatpush.bf16.xpose.msra.mxu0 0
        %541 = vmatpush.bf16.xpose.msra.mxu0 0
        %542 = vmatpush.bf16.xpose.msra.mxu0 0
        %543 = vmatpush.bf16.xpose.msra.mxu0 0
        %544 = vmatpush.bf16.xpose.msra.mxu0 0
        %545 = vmatpush.bf16.xpose.msra.mxu0 %v536
        %546 = vmatmul.bf16.gmra.mxu0 %v533
        %v547 = vpop.f32.mrf.mxu0
        %v548 = vadd.f32 0.0, %v547
        %v549 = vpop.f32.mrf.mxu0
        %550 = vdwg.mxu0
        %v551 = vsel %vm531, %v548, -inf
        %552 = vmax.xlane.f32.xlu0 %v551
        %v553 = vpop.xlane.xlu0 %552
        %v554 = vsub.f32 %v548, %v553
        %v555 = vmul.f32 %v554, 1.442695
        %v556 = vpow.pop %v555
        %v557 = vsel %vm531, %v556, 0.0
        %558 = vadd.xlane.f32.xlu0 %v557
        %v559 = vpop.xlane.xlu0 %558
        %v560 = vpack.c.bf16 %v556, %v556
        %v562 = vsel %vm531, %v560, 0
        %vm564 = vcmask 1043456
        %v566 = vsel %vm564, %v530, 0
        %568 = vmatpush.bf16.msra.mxu0 0
        %569 = vmatpush.bf16.msra.mxu0 0
        %570 = vmatpush.bf16.msra.mxu0 0
        %571 = vmatpush.bf16.msra.mxu0 0
        %572 = vmatpush.bf16.msra.mxu0 0
        %573 = vmatpush.bf16.msra.mxu0 0
        %574 = vmatpush.bf16.msra.mxu0 0
        %575 = vmatpush.bf16.msra.mxu0 %v566
        %576 = vmatmul.bf16.gmra.mxu0 %v562
        %v577 = vpop.f32.mrf.mxu0
        %v578 = vadd.f32 0.0, %v577
        %v579 = vpop.f32.mrf.mxu0
        %580 = vdwg.mxu0
        %v581 = vrcp.pop %v559
        %v582 = vmul.f32 %v578, %v581
        %v583 = vpack.c.bf16 %v582, %v582
        %vm584 = vcmask 60416
        %585 = vst.msk [vmem:[#allocation5] sm:$0xf] %vm584, %v583
        %v586 = vld [vmem:[#allocation2] sm:$0xf]
        %v587 = vld [vmem:[#allocation3] sm:$0xf]
        %v588 = vld [vmem:[#allocation4] sm:$0xf]
        %v590 = vunpack.c.l.b16 %v586
        %v591 = vpack.c.b16 %v590, %v590
        %592 = vrot.lane.b32.xlu0 %v591, 120
        %v593 = vpop.permute.xlu0 %592
        %v595 = vunpack.c.l.b16 %v587
        %v596 = vpack.c.b16 %v595, %v595
        %597 = vrot.lane.b32.xlu0 %v596, 120
        %v598 = vpop.permute.xlu0 %597
        %v600 = vsel %vm531, %v593, 0
        %v603 = vsel %vm531, %v598, 0
        %605 = vmatpush.bf16.xpose.msra.mxu0 0
        %606 = vmatpush.bf16.xpose.msra.mxu0 0
        %607 = vmatpush.bf16.xpose.msra.mxu0 0
        %608 = vmatpush.bf16.xpose.msra.mxu0 0
        %609 = vmatpush.bf16.xpose.msra.mxu0 0
        %610 = vmatpush.bf16.xpose.msra.mxu0 0
        %611 = vmatpush.bf16.xpose.msra.mxu0 0
        %612 = vmatpush.bf16.xpose.msra.mxu0 %v603
        %613 = vmatmul.bf16.gmra.mxu0 %v600
        %v614 = vpop.f32.mrf.mxu0
        %v615 = vadd.f32 0.0, %v614
        %v616 = vpop.f32.mrf.mxu0
        %617 = vdwg.mxu0
        %v618 = vsel %vm531, %v615, -inf
        %619 = vmax.xlane.f32.xlu0 %v618
        %v620 = vpop.xlane.xlu0 %619
        %v621 = vsub.f32 %v615, %v620
        %v622 = vmul.f32 %v621, 1.442695
        %v623 = vpow.pop %v622
        %v624 = vsel %vm531, %v623, 0.0
        %625 = vadd.xlane.f32.xlu0 %v624
        %v626 = vpop.xlane.xlu0 %625
        %v627 = vpack.c.bf16 %v623, %v623
        %v629 = vunpack.c.l.b16 %v588
        %v630 = vpack.c.b16 %v629, %v629
        %631 = vrot.lane.b32.xlu0 %v630, 120
        %v632 = vpop.permute.xlu0 %631
        %v634 = vsel %vm531, %v627, 0
        %v637 = vsel %vm564, %v632, 0
        %639 = vmatpush.bf16.msra.mxu0 0
        %640 = vmatpush.bf16.msra.mxu0 0
        %641 = vmatpush.bf16.msra.mxu0 0
        %642 = vmatpush.bf16.msra.mxu0 0
        %643 = vmatpush.bf16.msra.mxu0 0
        %644 = vmatpush.bf16.msra.mxu0 0
        %645 = vmatpush.bf16.msra.mxu0 0
        %646 = vmatpush.bf16.msra.mxu0 %v637
        %647 = vmatmul.bf16.gmra.mxu0 %v634
        %v648 = vpop.f32.mrf.mxu0
        %v649 = vadd.f32 0.0, %v648
        %v650 = vpop.f32.mrf.mxu0
        %651 = vdwg.mxu0
        %v652 = vrcp.pop %v626
        %v653 = vmul.f32 %v649, %v652
        %v654 = vpack.c.bf16 %v653, %v653
        %656 = vrot.lane.b32.xlu0 %v654, 8
        %v657 = vpop.permute.xlu0 %656
        %vm659 = vcmask 126016
        %660 = vst.msk [vmem:[#allocation5] sm:$0xf] %vm659, %v657
        %v661 = vld [vmem:[#allocation2] sm:$0xf]
        %v662 = vld [vmem:[#allocation3] sm:$0xf]
        %v663 = vld [vmem:[#allocation4] sm:$0xf]
        %v665 = vunpack.c.l.b16 %v661
        %v666 = vpack.c.b16 %v665, %v665
        %667 = vrot.lane.b32.xlu0 %v666, 112
        %v668 = vpop.permute.xlu0 %667
        %v670 = vunpack.c.l.b16 %v662
        %v671 = vpack.c.b16 %v670, %v670
        %672 = vrot.lane.b32.xlu0 %v671, 112
        %v673 = vpop.permute.xlu0 %672
        %v675 = vsel %vm531, %v668, 0
        %v678 = vsel %vm531, %v673, 0
        %680 = vmatpush.bf16.xpose.msra.mxu0 0
        %681 = vmatpush.bf16.xpose.msra.mxu0 0
        %682 = vmatpush.bf16.xpose.msra.mxu0 0
        %683 = vmatpush.bf16.xpose.msra.mxu0 0
        %684 = vmatpush.bf16.xpose.msra.mxu0 0
        %685 = vmatpush.bf16.xpose.msra.mxu0 0
        %686 = vmatpush.bf16.xpose.msra.mxu0 0
        %687 = vmatpush.bf16.xpose.msra.mxu0 %v678
        %688 = vmatmul.bf16.gmra.mxu0 %v675
        %v689 = vpop.f32.mrf.mxu0
        %v690 = vadd.f32 0.0, %v689
        %v691 = vpop.f32.mrf.mxu0
        %692 = vdwg.mxu0
        %v693 = vsel %vm531, %v690, -inf
        %694 = vmax.xlane.f32.xlu0 %v693
        %v695 = vpop.xlane.xlu0 %694
        %v696 = vsub.f32 %v690, %v695
        %v697 = vmul.f32 %v696, 1.442695
        %v698 = vpow.pop %v697
        %v699 = vsel %vm531, %v698, 0.0
        %700 = vadd.xlane.f32.xlu0 %v699
        %v701 = vpop.xlane.xlu0 %700
        %v702 = vpack.c.bf16 %v698, %v698
        %v704 = vunpack.c.l.b16 %v663
        %v705 = vpack.c.b16 %v704, %v704
        %706 = vrot.lane.b32.xlu0 %v705, 112
        %v707 = vpop.permute.xlu0 %706
        %v709 = vsel %vm531, %v702, 0
        %v712 = vsel %vm564, %v707, 0
        %714 = vmatpush.bf16.msra.mxu0 0
        %715 = vmatpush.bf16.msra.mxu0 0
        %716 = vmatpush.bf16.msra.mxu0 0
        %717 = vmatpush.bf16.msra.mxu0 0
        %718 = vmatpush.bf16.msra.mxu0 0
        %719 = vmatpush.bf16.msra.mxu0 0
        %720 = vmatpush.bf16.msra.mxu0 0
        %721 = vmatpush.bf16.msra.mxu0 %v712
        %722 = vmatmul.bf16.gmra.mxu0 %v709
        %v723 = vpop.f32.mrf.mxu0
        %v724 = vadd.f32 0.0, %v723
        %v725 = vpop.f32.mrf.mxu0
        %726 = vdwg.mxu0
        %v727 = vrcp.pop %v701
        %v728 = vmul.f32 %v724, %v727
        %v729 = vpack.c.bf16 %v728, %v728
        %731 = vrot.lane.b32.xlu0 %v729, 16
        %v732 = vpop.permute.xlu0 %731
        %vm734 = vcmask 191616
        %735 = vst.msk [vmem:[#allocation5] sm:$0xf] %vm734, %v732
        %v736 = vld [vmem:[#allocation2] sm:$0xf]
        %v737 = vld [vmem:[#allocation3] sm:$0xf]
        %v738 = vld [vmem:[#allocation4] sm:$0xf]
        %v740 = vunpack.c.l.b16 %v736
        %v741 = vpack.c.b16 %v740, %v740
        %742 = vrot.lane.b32.xlu0 %v741, 104
        %v743 = vpop.permute.xlu0 %742
        %v745 = vunpack.c.l.b16 %v737
        %v746 = vpack.c.b16 %v745, %v745
        %747 = vrot.lane.b32.xlu0 %v746, 104
        %v748 = vpop.permute.xlu0 %747
        %v750 = vsel %vm531, %v743, 0
        %v753 = vsel %vm531, %v748, 0
        %755 = vmatpush.bf16.xpose.msra.mxu0 0
        %756 = vmatpush.bf16.xpose.msra.mxu0 0
        %757 = vmatpush.bf16.xpose.msra.mxu0 0
        %758 = vmatpush.bf16.xpose.msra.mxu0 0
        %759 = vmatpush.bf16.xpose.msra.mxu0 0
        %760 = vmatpush.bf16.xpose.msra.mxu0 0
        %761 = vmatpush.bf16.xpose.msra.mxu0 0
        %762 = vmatpush.bf16.xpose.msra.mxu0 %v753
        %763 = vmatmul.bf16.gmra.mxu0 %v750
        %v764 = vpop.f32.mrf.mxu0
        %v765 = vadd.f32 0.0, %v764
        %v766 = vpop.f32.mrf.mxu0
        %767 = vdwg.mxu0
        %v768 = vsel %vm531, %v765, -inf
        %769 = vmax.xlane.f32.xlu0 %v768
        %v770 = vpop.xlane.xlu0 %769
        %v771 = vsub.f32 %v765, %v770
        %v772 = vmul.f32 %v771, 1.442695
        %v773 = vpow.pop %v772
        %v774 = vsel %vm531, %v773, 0.0
        %775 = vadd.xlane.f32.xlu0 %v774
        %v776 = vpop.xlane.xlu0 %775
        %v777 = vpack.c.bf16 %v773, %v773
        %v779 = vunpack.c.l.b16 %v738
        %v780 = vpack.c.b16 %v779, %v779
        %781 = vrot.lane.b32.xlu0 %v780, 104
        %v782 = vpop.permute.xlu0 %781
        %v784 = vsel %vm531, %v777, 0
        %v787 = vsel %vm564, %v782, 0
        %789 = vmatpush.bf16.msra.mxu0 0
        %790 = vmatpush.bf16.msra.mxu0 0
        %791 = vmatpush.bf16.msra.mxu0 0
        %792 = vmatpush.bf16.msra.mxu0 0
        %793 = vmatpush.bf16.msra.mxu0 0
        %794 = vmatpush.bf16.msra.mxu0 0
        %795 = vmatpush.bf16.msra.mxu0 0
        %796 = vmatpush.bf16.msra.mxu0 %v787
        %797 = vmatmul.bf16.gmra.mxu0 %v784
        %v798 = vpop.f32.mrf.mxu0
        %v799 = vadd.f32 0.0, %v798
        %v800 = vpop.f32.mrf.mxu0
        %801 = vdwg.mxu0
        %v802 = vrcp.pop %v776
        %v803 = vmul.f32 %v799, %v802
        %v804 = vpack.c.bf16 %v803, %v803
        %806 = vrot.lane.b32.xlu0 %v804, 24
        %v807 = vpop.permute.xlu0 %806
        %vm809 = vcmask 257216
        %810 = vst.msk [vmem:[#allocation5] sm:$0xf] %vm809, %v807
        %v811 = vld [vmem:[#allocation5] sm:$0xf]
        %v812 = vld [vmem:[#allocation14] sm:$0xf]
        %v813 = vld [vmem:[#allocation14 + $0x4] sm:$0xf]
        %v814 = vld [vmem:[#allocation14 + $0x8] sm:$0xf]
        %v815 = vld [vmem:[#allocation14 + $0xc] sm:$0xf]
        %v816 = vld [vmem:[%s8] sm:$0x1]
        %v818 = vperm.slane %v816, 0
        %v824 = vunpack.c.l.b16 %v812
        %v825 = vunpack.c.l.b16 %v813
        %v826 = vunpack.c.l.b16 %v814
        %v827 = vunpack.c.l.b16 %v815
        %v828 = vpack.c.b16 %v825, %v824
        %v829 = vpack.c.b16 %v827, %v826
        %v833 = vsel %vm438, %v811, 0
        %835 = vmatpush.bf16.msra.mxu0 0
        %836 = vmatpush.bf16.msra.mxu0 0
        %837 = vmatpush.bf16.msra.mxu0 0
        %838 = vmatpush.bf16.msra.mxu0 0
        %839 = vmatpush.bf16.msra.mxu0 0
        %840 = vmatpush.bf16.msra.mxu0 0
        %841 = vmatpush.bf16.msra.mxu0 %v829
        %842 = vmatpush.bf16.msra.mxu0 %v828
        %843 = vmatmul.bf16.gmra.mxu0 %v833
        %v844 = vpop.f32.mrf.mxu0
        %v845 = vadd.f32 %v818, %v844
        %v846 = vpop.f32.mrf.mxu0
        %847 = vdwg.mxu0
        %848 = vst.msk [vmem:[%s415] sm:$0xff] %vm438, %v845
        %s849 = sand.u32 %s230, 1
        %s850 = scalar_lea.sflag [#allocation8], %s849
        %s851 = sand.u32 %s230, 1
        %s852 = smul.addr %s851, 8
        %s853 = scalar_lea.vmem [#allocation15], %s852
        // Predicated region
        $region77: #{tpu_custom_call.1} parent=55 // pred_check
          %p854 = pneg %p240
        $region78: #{tpu_custom_call.1} parent=55 // pred_check_branch
          %856 = sbr.rel (%p854) target = $region80
        $region79: #{tpu_custom_call.1} parent=55 // pred_region
          %858 = vsyncadd %s850, 0
          %s859 = smul.addr %s28, 8
          %s860 = scalar_lea.hbm %s9, %s859
          %s862 = sshll.u32 %s853, 4
          %s863 = int_to_ptr.vmem [resolvable:$true] %s862
          %s864 = sshll.u32 %s860, 4
          %s865 = int_to_ptr.hbm [resolvable:$true] %s864
          %867 = dma.vmem_to_hbm [thread:$0]  %s863, 128, %s865, %s850
        $region80: #{tpu_custom_call.1} parent=55 // pred_fallthru
          _
      $region56: #{tpu_custom_call.1} parent=5 // pred_fallthru
        _
      %p868 = scmp.le.s32.totalorder 2, %s23
      // Predicated region
      $region81: #{tpu_custom_call.1} parent=5 // pred_check
        %p869 = pneg %p868
      $region82: #{tpu_custom_call.1} parent=5 // pred_check_branch
        %871 = sbr.rel (%p869) target = $region84
      $region83: #{tpu_custom_call.1} parent=5 // pred_region
        %s872 = ssub.s32 %s23, 2
        // Predicated region
        $region85: #{tpu_custom_call.1} parent=83 // pred_check
          %p873 = pneg %p246
        $region86: #{tpu_custom_call.1} parent=83 // pred_check_branch
          %875 = sbr.rel (%p873) target = $region88
        $region87: #{tpu_custom_call.1} parent=83 // pred_region
          %s876 = sand.u32 %s231, 1
          %s877 = scalar_lea.sflag [#allocation8], %s876
          %s878 = sand.u32 %s231, 1
          %s879 = smul.addr %s878, 8
          %s880 = scalar_lea.vmem [#allocation15], %s879
          %882 = dma.done %s877, 128
        $region88: #{tpu_custom_call.1} parent=83 // pred_fallthru
          _
      $region84: #{tpu_custom_call.1} parent=5 // pred_fallthru
        _
    $region6: #{tpu_custom_call.1} parent=1 // loop_footer
      %s27 = sadd.s32 1, %s23
    $region7: #{tpu_custom_call.1} parent=1 // loop_footer_branch
      %22 = sbr.rel target = $region3
    $region8: #{tpu_custom_call.1} parent=1 // loop_exit
      _
    %883 = vsyncpa [#allocation7], 1
    %s884 = scalar_lea.sflag [#allocation7], 1
    %885 = vsyncpa %s884, 1
    %886 = vsyncpa [#allocation10], 1
    %887 = vsyncpa [#allocation13], 1
    %888 = vsyncpa [#allocation8], 1
    %s889 = scalar_lea.sflag [#allocation8], 1
    %890 = vsyncpa %s889, 1

</llo_original>
